<compile_context>
chip_gen: v5e
topology: v5e:2x2
jax: 0.10.0
libtpu: 0.0.40
codegen_flags: <defaults>
</compile_context>

<pallas_src>
import jax
import jax.numpy as jnp
from jax import lax
from jax.experimental import pallas as pl
from jax.experimental.pallas import tpu as pltpu


def _round_up(x, m):
    return (x + m - 1) // m * m


def _classifier_kernel(x_ref, w_ref, o_ref):
    # x_ref: (tm, d_pad)   activation tile (flattened decoder output)
    # w_ref: (tn, d_pad)   shared-embedding weight tile (nn.Embedding layout)
    # o_ref: (tm, tn)      logits tile
    # Contract over d_model of both operands: x @ w.T without materializing
    # the transpose (MXU handles the layout).  f32 accumulation.
    o_ref[...] = lax.dot_general(
        x_ref[...],
        w_ref[...],
        dimension_numbers=(((1,), (1,)), ((), ())),
        preferred_element_type=jnp.float32,
    ).astype(o_ref.dtype)


def classifier_forward(
    decoder_out,
    shared_embed_weight,
    *,
    compute_dtype=jnp.bfloat16,
    tm_target=256,   # v7x-safe; can be raised on v5e/v6e (128 MiB VMEM)
    tn_target=512,
):
    """
    decoder_out:          (b, l, d_model) float32
    shared_embed_weight:  (V, d_model)    float32  (nn.Embedding weight layout)
    returns logits:       (b, l, V)       float32
    """
    b, l, d_model = decoder_out.shape
    vocab_size, d_w = shared_embed_weight.shape
    assert d_w == d_model
    m = b * l

    # --- tile / padding selection (lane-dense, sublane-aligned) -------------
    tm = min(tm_target, _round_up(m, 16))            # 16 covers bf16+f32 sublane packing
    tn = min(tn_target, _round_up(vocab_size, 128))  # lane-dense output tile
    m_pad = _round_up(m, tm)
    v_pad = _round_up(vocab_size, tn)
    d_pad = _round_up(d_model, 128)

    x2d = decoder_out.reshape(m, d_model)
    if (m_pad, d_pad) != (m, d_model):
        x2d = jnp.pad(x2d, ((0, m_pad - m), (0, d_pad - d_model)))
    w = shared_embed_weight
    if (v_pad, d_pad) != (vocab_size, d_model):
        w = jnp.pad(w, ((0, v_pad - vocab_size), (0, d_pad - d_model)))

    x2d = x2d.astype(compute_dtype)
    w = w.astype(compute_dtype)

    n_v = v_pad // tn
    n_m = m_pad // tm

    itemsize = jnp.dtype(compute_dtype).itemsize
    # double-buffered input tiles + double-buffered f32 output tile
    block_bytes = 2 * (tm * d_pad + tn * d_pad) * itemsize + 2 * tm * tn * 4
    vmem_limit = int(min(64 * 2**20, max(32 * 2**20, int(block_bytes * 1.5))))

    cost = pl.CostEstimate(
        flops=2 * m_pad * v_pad * d_pad,
        transcendentals=0,
        bytes_accessed=(m_pad * d_pad + v_pad * d_pad) * itemsize
        + m_pad * v_pad * 4,
    )

    out = pl.pallas_call(
        _classifier_kernel,
        out_shape=jax.ShapeDtypeStruct((m_pad, v_pad), jnp.float32),
        grid_spec=pltpu.PrefetchScalarGridSpec(
            num_scalar_prefetch=0,
            # vocab axis outermost (slow), M axis innermost (fast):
            # weight tile index is constant over the inner axis -> stays resident.
            grid=(n_v, n_m),
            in_specs=[
                pl.BlockSpec((tm, d_pad), lambda j, i: (i, 0)),   # activations
                pl.BlockSpec((tn, d_pad), lambda j, i: (j, 0)),   # embedding weight
            ],
            out_specs=pl.BlockSpec((tm, tn), lambda j, i: (i, j)),
        ),
        compiler_params=pltpu.CompilerParams(
            dimension_semantics=("parallel", "parallel"),
            vmem_limit_bytes=vmem_limit,
        ),
        cost_estimate=cost,
    )(x2d, w)

    logits = out[:m, :vocab_size].reshape(b, l, vocab_size)
    assert logits.shape == (b, l, vocab_size)
    return logits


if __name__ == "__main__":
    # Small shapes consistent with the module's forward:
    #   batch=2, out_len=8, d_model=32, vocab_size=32
    b, l, d_model, vocab_size = 2, 8, 32, 32

    key = jax.random.PRNGKey(0)
    k_x, k_w = jax.random.split(key)

    decoder_out = jax.random.normal(k_x, (b, l, d_model), dtype=jnp.float32)
    # Deterministic synthetic "shared embedding" weight, shape (V, d_model),
    # same layout as nn.Embedding(vocab_size, d_model).weight.
    shared_embed_weight = jax.random.normal(
        k_w, (vocab_size, d_model), dtype=jnp.float32
    ) * (1.0 / jnp.sqrt(d_model))

    # Reference in plain JAX (same semantics as torch.matmul with .t()).
    ref = jnp.einsum("bld,vd->blv", decoder_out, shared_embed_weight)

    # Default bf16 fast path (MXU-native inputs, f32 accumulation).
    logits_bf16 = classifier_forward(decoder_out, shared_embed_weight)
    logits_bf16 = jax.block_until_ready(logits_bf16)
    assert logits_bf16.shape == (b, l, vocab_size)
    assert logits_bf16.dtype == jnp.float32
    assert jnp.allclose(logits_bf16, ref, atol=5e-2, rtol=5e-2)

    # Full-precision path, tight check against the f32 reference.
    logits_f32 = classifier_forward(
        decoder_out, shared_embed_weight, compute_dtype=jnp.float32
    )
    logits_f32 = jax.block_until_ready(logits_f32)
    assert logits_f32.shape == (b, l, vocab_size)
    assert jnp.allclose(logits_f32, ref, atol=1e-4, rtol=1e-4)

    print("KERNEL_OK")
</pallas_src>

<mosaic_0001>
module attributes {stable_mosaic.version = 11 : i64} {
  func.func @_classifier_kernel(%arg0: i32, %arg1: i32, %arg2: memref<16x128xbf16, #tpu.memory_space<vmem>>, %arg3: memref<128x128xbf16, #tpu.memory_space<vmem>>, %arg4: memref<16x128xf32, #tpu.memory_space<vmem>>) attributes {dimension_semantics = [#tpu.dimension_semantics<parallel>, #tpu.dimension_semantics<parallel>], iteration_bounds = array<i64: 1, 1>, scalar_prefetch = 0 : i64, scratch_operands = 0 : i64, tpu.core_type = #tpu.core_type<tc>, window_params = [{transform_indices = @transform_0, window_bounds = array<i64: 16, 128>}, {transform_indices = @transform_1, window_bounds = array<i64: 128, 128>}, {transform_indices = @transform_2, window_bounds = array<i64: 16, 128>}]} {
    %c0 = arith.constant 0 : index
    %c0_0 = arith.constant 0 : index
    %0 = vector.load %arg2[%c0, %c0_0] : memref<16x128xbf16, #tpu.memory_space<vmem>>, vector<16x128xbf16>
    %c0_1 = arith.constant 0 : index
    %c0_2 = arith.constant 0 : index
    %1 = vector.load %arg3[%c0_1, %c0_2] : memref<128x128xbf16, #tpu.memory_space<vmem>>, vector<128x128xbf16>
    %cst = arith.constant dense<0.000000e+00> : vector<16x128xf32>
    %2 = tpu.matmul %0, %1, %cst {dimension_numbers = #tpu.dot_dimension_numbers<[1], [1], [0], [0], [0, 0, 1, 0], [], []>} : vector<16x128xbf16>, vector<128x128xbf16>, vector<16x128xf32> -> vector<16x128xf32>
    %c0_3 = arith.constant 0 : index
    %c0_4 = arith.constant 0 : index
    %3 = vector.load %arg4[%c0_3, %c0_4] : memref<16x128xf32, #tpu.memory_space<vmem>>, vector<16x128xf32>
    tpu.vector_store %arg4[%c0_3, %c0_4], %2 {strides = array<i32>} : memref<16x128xf32, #tpu.memory_space<vmem>>, vector<16x128xf32>,
    return
  }
  func.func @transform_0(%arg0: i32, %arg1: i32) -> (i32, i32) {
    %c0_i32 = arith.constant 0 : i32
    %c0_i32_0 = arith.constant 0 : i32
    return %arg1, %c0_i32 : i32, i32
  }
  func.func @transform_1(%arg0: i32, %arg1: i32) -> (i32, i32) {
    %c0_i32 = arith.constant 0 : i32
    %c0_i32_0 = arith.constant 0 : i32
    return %arg0, %c0_i32 : i32, i32
  }
  func.func @transform_2(%arg0: i32, %arg1: i32) -> (i32, i32) {
    %c0_i32 = arith.constant 0 : i32
    return %arg1, %arg0 : i32, i32
  }
}

</mosaic_0001>

<llo_original>
// kernel: tpu_custom_call.1
$region0: #{tpu_custom_call.1}
  #allocation0 [shape = 'u32[]', space=smem, size = 0x4, offset = 0x4, fixed_abs, tag = 'smem constant byte address 0x4 - core index']
  #allocation1 [shape = 'u32[72,128]{1,0:T(1,128)}', space=vmem, size = 0x9000, scoped, tag = 'internal scratch']
  %s0 = inlined_call_operand.hbm [shape: bf16[16,128], index: 0, kind: input, shape index: {}]
  %s1 = inlined_call_operand.hbm [shape: bf16[128,128], index: 1, kind: input, shape index: {}]
  %s2 = inlined_call_operand.hbm [shape: f32[16,128], index: 2, kind: output, shape index: {}]
  %s3 = sld [smem:[#allocation0]]
  $region26: #{tpu_custom_call.1} parent=0
    _
  %s5 = ssub.s32 1, %s3
  %s6 = scalar_select 0, %s5, %s3
  $region1: #{tpu_custom_call.1} parent=0
    #allocation2 [shape = 'u8[4096]{0}', space=vmem, size = 0x1000, scoped, tag = 'input window, operand 0, single buffered']
    #allocation3 [shape = 's32[1]{0}', space=sflag, size = 0x4, scoped, tag = 'scoped memory for tpu_custom_call.1']
    #allocation4 [shape = 's32[1]{0}', space=sflag, size = 0x4, scoped, tag = 'scoped memory for tpu_custom_call.1']
    #allocation5 [shape = 'u8[32768]{0}', space=vmem, size = 0x8000, scoped, tag = 'input window, operand 1, single buffered']
    #allocation6 [shape = 's32[1]{0}', space=sflag, size = 0x4, scoped, tag = 'scoped memory for tpu_custom_call.1']
    #allocation7 [shape = 'u8[8192]{0}', space=vmem, size = 0x2000, scoped, tag = 'output window, operand 0, single buffered']
    %7 = vsyncpa [#allocation3], 0
    %8 = vsyncpa [#allocation6], 0
    %9 = vsyncpa [#allocation4], 0
    // Predicated region
    $region2: #{tpu_custom_call.1} parent=1 // pred_check
      _
    $region3: #{tpu_custom_call.1} parent=1 // pred_check_branch
      %11 = sbr.rel (0) target = $region5
    $region4: #{tpu_custom_call.1} parent=1 // pred_region
      %13 = vsyncadd [#allocation3], 0
      %s14 = sshll.u32 %s0, 4
      %s15 = int_to_ptr.hbm [resolvable:$true] %s14
      %s16 = sshll.u32 [#allocation2], 4
      %s17 = int_to_ptr.vmem [resolvable:$true] %s16
      %22 = dma.hbm_to_vmem [thread:$0]  %s15, 128, %s17, [#allocation3], 64, 64, 4
    $region5: #{tpu_custom_call.1} parent=1 // pred_fallthru
      _
    // Predicated region
    $region6: #{tpu_custom_call.1} parent=1 // pred_check
      _
    $region7: #{tpu_custom_call.1} parent=1 // pred_check_branch
      %24 = sbr.rel (0) target = $region9
    $region8: #{tpu_custom_call.1} parent=1 // pred_region
      %26 = vsyncadd [#allocation6], 0
      %s27 = sshll.u32 %s1, 4
      %s28 = int_to_ptr.hbm [resolvable:$true] %s27
      %s29 = sshll.u32 [#allocation5], 4
      %s30 = int_to_ptr.vmem [resolvable:$true] %s29
      %35 = dma.hbm_to_vmem [thread:$0]  %s28, 1024, %s30, [#allocation6], 64, 64, 4
    $region9: #{tpu_custom_call.1} parent=1 // pred_fallthru
      _
    // Predicated region
    $region10: #{tpu_custom_call.1} parent=1 // pred_check
      _
    $region11: #{tpu_custom_call.1} parent=1 // pred_check_branch
      %37 = sbr.rel (0) target = $region13
    $region12: #{tpu_custom_call.1} parent=1 // pred_region
      %39 = dma.done [#allocation3], 128
    $region13: #{tpu_custom_call.1} parent=1 // pred_fallthru
      _
    // Predicated region
    $region14: #{tpu_custom_call.1} parent=1 // pred_check
      _
    $region15: #{tpu_custom_call.1} parent=1 // pred_check_branch
      %41 = sbr.rel (0) target = $region17
    $region16: #{tpu_custom_call.1} parent=1 // pred_region
      %43 = dma.done [#allocation6], 1024
    $region17: #{tpu_custom_call.1} parent=1 // pred_fallthru
      _
    %v44 = vld [vmem:[#allocation2] sm:$0xf]
    %v45 = vld [vmem:[#allocation2 + $0x4] sm:$0xf]
    %v46 = vld [vmem:[#allocation5] sm:$0xf]
    %v47 = vld [vmem:[#allocation5 + $0x4] sm:$0xf]
    %v48 = vld [vmem:[#allocation5 + $0x8] sm:$0xf]
    %v49 = vld [vmem:[#allocation5 + $0xc] sm:$0xf]
    %v50 = vld [vmem:[#allocation5 + $0x10] sm:$0xf]
    %v51 = vld [vmem:[#allocation5 + $0x14] sm:$0xf]
    %v52 = vld [vmem:[#allocation5 + $0x18] sm:$0xf]
    %v53 = vld [vmem:[#allocation5 + $0x1c] sm:$0xf]
    %v54 = vld [vmem:[#allocation5 + $0x20] sm:$0xf]
    %v55 = vld [vmem:[#allocation5 + $0x24] sm:$0xf]
    %v56 = vld [vmem:[#allocation5 + $0x28] sm:$0xf]
    %v57 = vld [vmem:[#allocation5 + $0x2c] sm:$0xf]
    %v58 = vld [vmem:[#allocation5 + $0x30] sm:$0xf]
    %v59 = vld [vmem:[#allocation5 + $0x34] sm:$0xf]
    %v60 = vld [vmem:[#allocation5 + $0x38] sm:$0xf]
    %v61 = vld [vmem:[#allocation5 + $0x3c] sm:$0xf]
    %v64 = vunpack.c.l.b16 %v44
    %v65 = vunpack.c.l.b16 %v45
    %v66 = vpack.c.b16 %v65, %v64
    %v84 = vunpack.c.l.b16 %v46
    %v85 = vunpack.c.l.b16 %v47
    %v86 = vunpack.c.l.b16 %v48
    %v87 = vunpack.c.l.b16 %v49
    %v88 = vunpack.c.l.b16 %v50
    %v89 = vunpack.c.l.b16 %v51
    %v90 = vunpack.c.l.b16 %v52
    %v91 = vunpack.c.l.b16 %v53
    %v92 = vunpack.c.l.b16 %v54
    %v93 = vunpack.c.l.b16 %v55
    %v94 = vunpack.c.l.b16 %v56
    %v95 = vunpack.c.l.b16 %v57
    %v96 = vunpack.c.l.b16 %v58
    %v97 = vunpack.c.l.b16 %v59
    %v98 = vunpack.c.l.b16 %v60
    %v99 = vunpack.c.l.b16 %v61
    %v100 = vpack.c.b16 %v85, %v84
    %v101 = vpack.c.b16 %v87, %v86
    %v102 = vpack.c.b16 %v89, %v88
    %v103 = vpack.c.b16 %v91, %v90
    %v104 = vpack.c.b16 %v93, %v92
    %v105 = vpack.c.b16 %v95, %v94
    %v106 = vpack.c.b16 %v97, %v96
    %v107 = vpack.c.b16 %v99, %v98
    %116 = vmatpush.bf16.xpose.msra.mxu0 %v107
    %117 = vmatpush.bf16.xpose.msra.mxu0 %v106
    %118 = vmatpush.bf16.xpose.msra.mxu0 %v105
    %119 = vmatpush.bf16.xpose.msra.mxu0 %v104
    %120 = vmatpush.bf16.xpose.msra.mxu0 %v103
    %121 = vmatpush.bf16.xpose.msra.mxu0 %v102
    %122 = vmatpush.bf16.xpose.msra.mxu0 %v101
    %123 = vmatpush.bf16.xpose.msra.mxu0 %v100
    %124 = vmatmul.bf16.gmra.mxu0 %v66
    %v125 = vpop.f32.mrf.mxu0
    %v126 = vadd.f32 0.0, %v125
    %v127 = vpop.f32.mrf.mxu0
    %v128 = vadd.f32 0.0, %v127
    %129 = vdwg.mxu0
    %130 = vst [vmem:[#allocation7] sm:$0xff] %v126
    %131 = vst [vmem:[#allocation7 + $0x8] sm:$0xff] %v128
    // Predicated region
    $region18: #{tpu_custom_call.1} parent=1 // pred_check
      _
    $region19: #{tpu_custom_call.1} parent=1 // pred_check_branch
      %133 = sbr.rel (0) target = $region21
    $region20: #{tpu_custom_call.1} parent=1 // pred_region
      %135 = vsyncadd [#allocation4], 0
      %s136 = sshll.u32 [#allocation7], 4
      %s137 = int_to_ptr.vmem [resolvable:$true] %s136
      %s138 = sshll.u32 %s2, 4
      %s139 = int_to_ptr.hbm [resolvable:$true] %s138
      %144 = dma.vmem_to_hbm [thread:$0]  %s137, 256, %s139, [#allocation4], 128, 128, 8
    $region21: #{tpu_custom_call.1} parent=1 // pred_fallthru
      _
    // Predicated region
    $region22: #{tpu_custom_call.1} parent=1 // pred_check
      _
    $region23: #{tpu_custom_call.1} parent=1 // pred_check_branch
      %146 = sbr.rel (0) target = $region25
    $region24: #{tpu_custom_call.1} parent=1 // pred_region
      %148 = dma.done [#allocation4], 256
    $region25: #{tpu_custom_call.1} parent=1 // pred_fallthru
      _
    %149 = vsyncpa [#allocation3], 1
    %150 = vsyncpa [#allocation6], 1
    %151 = vsyncpa [#allocation4], 1

</llo_original>
